<compile_context>
chip_gen: v5e
topology: v5e:2x2
jax: 0.10.0
libtpu: 0.0.40
codegen_flags: <defaults>
</compile_context>

<pallas_src>
import functools

import jax
import jax.numpy as jnp
from jax.experimental import pallas as pl
from jax.experimental.pallas import tpu as pltpu


# ---------------------------------------------------------------------------
# Kernel
# ---------------------------------------------------------------------------

def _down_kernel(xs_ref, wt_ref, *rest, tap_offsets, mask_row, inv_n,
                 apply_norm, eps, slope):
    """Fused conv (tap-group matmuls) [+ InstanceNorm] + LeakyReLU for one
    (batch, filter-tile) grid step.

    xs_ref: (1, Cs, Pl)  bf16   space-to-depth input (flat spatial, lane axis),
                                 row `mask_row` holds the valid-position mask.
    wt_ref: (T, Ft, Cs)  bf16   per-tap-group weight matrices.
    rest:   (o_ref,)             when apply_norm
            (b_ref, o_ref)       otherwise; b_ref: (Ft, 1) f32
    o_ref:  (1, Ft, Pl)  out dtype
    """
    if apply_norm:
        (o_ref,) = rest
    else:
        b_ref, o_ref = rest

    xs = xs_ref[0]                                   # (Cs, Pl) bf16
    plen = xs.shape[-1]

    # Conv: accumulate the tap-group matmuls in f32.  Tap offsets become lane
    # rolls of the f32 partial results (XLU work, overlaps with MXU/VPU).
    # (On v7x the MRB would accumulate these in place; on v5e/v6e the taps could
    #  be concatenated along K in VMEM for deeper vmatmul pushes -- not needed
    #  here since the kernel is HBM-bandwidth bound.)
    y = None
    for t, off in enumerate(tap_offsets):
        zt = jnp.dot(wt_ref[t], xs, preferred_element_type=jnp.float32)   # (Ft, Pl)
        if off:
            zt = pltpu.roll(zt, shift=plen - off, axis=1)                 # zt[p] <- zt[p+off]
        y = zt if y is None else y + zt

    if apply_norm:
        # Bias is mathematically cancelled by the mean subtraction -> never added.
        mask = xs[mask_row:mask_row + 1, :].astype(jnp.float32)           # (1, Pl) in {0,1}
        ym = y * mask
        ssum = jnp.sum(ym, axis=1, keepdims=True)                         # (Ft, 1)
        ssq = jnp.sum(ym * y, axis=1, keepdims=True)                      # sum(mask * y^2)
        mean = ssum * inv_n
        var = jnp.maximum(ssq * inv_n - mean * mean, 0.0)
        y = (y - mean) * jax.lax.rsqrt(var + eps)
    else:
        y = y + b_ref[...]                                                # (Ft, 1) broadcast

    o_ref[0] = jnp.where(y >= 0.0, y, slope * y).astype(o_ref.dtype)


# ---------------------------------------------------------------------------
# Host-side helpers
# ---------------------------------------------------------------------------

def _round_up(x, m):
    return ((x + m - 1) // m) * m


def _tpu_vmem_capacity_bytes():
    """Generation-aware VMEM capacity (v7x: 64 MiB, v5e/v6e: 128 MiB)."""
    try:
        info = pltpu.get_tpu_info()
        cap = getattr(info, "vmem_capacity_bytes", None)
        if cap:
            return int(cap)
    except Exception:
        pass
    return 64 * 1024 * 1024   # conservative fallback = v7x physical VMEM per core


def _step_vmem_bytes(ft, cs, plen, n_taps, out_bytes):
    """Rough per-grid-step working set: double-buffered pipeline IO + f32 temporaries."""
    io = (2 * (cs * plen * 2)            # xs block (bf16)
          + 2 * (ft * plen * out_bytes)  # output block
          + 2 * (n_taps * ft * cs * 2)   # weights
          + 2 * (ft * 4))                # bias
    tmp = 2 * (ft * plen * 4) + cs * plen * 2   # f32 accumulator + rolled partial + xs value
    return io + tmp + (1 << 20)


def _choose_f_tile(F, cs, plen, n_taps, out_bytes, budget, prefer_split):
    """Largest filter tile (divisor of F, multiple of 8 unless == F) fitting the budget.
    `prefer_split` (B == 1) requests >= 2 tiles so both v7x TensorCores get work."""
    tiles = [d for d in range(F, 0, -1) if F % d == 0 and (d == F or d % 8 == 0)]
    chosen = None
    for d in tiles:
        if _step_vmem_bytes(d, cs, plen, n_taps, out_bytes) <= budget:
            chosen = d
            break
    if chosen is None:
        chosen = tiles[-1]   # may exceed budget for extreme shapes; see TODO(synk) above
    if prefer_split and chosen == F:
        for d in tiles:
            if d < F and _step_vmem_bytes(d, cs, plen, n_taps, out_bytes) <= budget:
                chosen = d
                break
    return chosen


# ---------------------------------------------------------------------------
# Forward pass
# ---------------------------------------------------------------------------

def downsampler_forward(x, weight, bias, *, stride=2, padding=1,
                        apply_instancenorm=True, eps=1e-5, slope=0.01,
                        out_dtype=jnp.float32, f_tile=None):
    """x: [B, C, H, W] NCHW.  weight: [F, C, kh, kw].  bias: [F].
    Returns [B, F, Ho, Wo] NCHW in `out_dtype` (use bf16 when feeding another bf16 conv)."""
    if x.ndim != 4:
        raise ValueError(f"Input expected to have 4 dimensions, got {x.ndim} instead.")
    B, C, H, W = x.shape
    F, Cw, kh, kw = weight.shape
    assert Cw == C, "channel mismatch"
    s, p = stride, padding
    assert kh % s == 0 and kw % s == 0, "kernel_size must be a multiple of stride"

    # True output extent (PyTorch conv formula).
    Ho = (H + 2 * p - kh) // s + 1
    Wo = (W + 2 * p - kw) // s + 1
    assert Ho >= 1 and Wo >= 1

    # Extra bottom/right zero padding so the padded extent divides the stride.
    eh = (-(H + 2 * p)) % s
    ew = (-(W + 2 * p)) % s
    Hp, Wp = H + 2 * p + eh, W + 2 * p + ew
    Hh, Wh = Hp // s, Wp // s                  # space-to-depth block grid
    tb_h, tb_w = kh // s, kw // s              # tap-group extent (2x2 for defaults)
    n_taps = tb_h * tb_w
    Cin_s2d = C * s * s
    Cs = Cin_s2d + 1                           # +1 mask channel
    Pp = Hh * Wh
    Pl = max(128, _round_up(Pp, 128))          # lane-dense padded flat spatial length

    # ---- glue (one ~1x copy): pad + space-to-depth + flatten, append mask channel.
    xb = x.astype(jnp.bfloat16)
    xp = jnp.pad(xb, ((0, 0), (0, 0), (p, p + eh), (p, p + ew)))
    xs = xp.reshape(B, C, Hh, s, Wh, s).transpose(0, 1, 3, 5, 2, 4)
    xs = xs.reshape(B, Cin_s2d, Hh, Wh)
    mask2d = ((jnp.arange(Hh)[:, None] < Ho) & (jnp.arange(Wh)[None, :] < Wo))
    mask2d = mask2d.astype(jnp.bfloat16)[None, None]
    xs = jnp.concatenate([xs, jnp.broadcast_to(mask2d, (B, 1, Hh, Wh))], axis=1)
    xs = xs.reshape(B, Cs, Pp)
    xs = jnp.pad(xs, ((0, 0), (0, 0), (0, Pl - Pp)))                      # (B, Cs, Pl)

    # Per-tap-group weights: (n_taps, F, Cs); K ordered (c, a, b) to match xs channels,
    # with a zero weight for the mask channel.
    w6 = weight.reshape(F, C, tb_h, s, tb_w, s)
    w_tap = w6.transpose(2, 4, 0, 1, 3, 5).reshape(n_taps, F, Cin_s2d)
    w_tap = jnp.pad(w_tap, ((0, 0), (0, 0), (0, 1))).astype(jnp.bfloat16)  # (T, F, Cs)

    tap_offsets = tuple(di * Wh + dj for di in range(tb_h) for dj in range(tb_w))

    # ---- tiling / VMEM budget (generation aware).
    out_bytes = jnp.dtype(out_dtype).itemsize
    cap = _tpu_vmem_capacity_bytes()
    budget = int(cap * 0.40)
    if f_tile is None:
        Ft = _choose_f_tile(F, Cs, Pl, n_taps, out_bytes, budget,
                            prefer_split=(B == 1 and F >= 16))
    else:
        assert F % f_tile == 0 and (f_tile == F or f_tile % 8 == 0)
        Ft = f_tile
    nFt = F // Ft
    need = _step_vmem_bytes(Ft, Cs, Pl, n_taps, out_bytes)
    vmem_limit = max(need + (8 << 20), 32 << 20)
    vmem_limit = min(vmem_limit, int(cap * 0.9))

    kernel = functools.partial(
        _down_kernel,
        tap_offsets=tap_offsets, mask_row=Cin_s2d,
        inv_n=1.0 / float(Ho * Wo),
        apply_norm=bool(apply_instancenorm),
        eps=float(eps), slope=float(slope))

    xs_spec = pl.BlockSpec((1, Cs, Pl), lambda b, f: (b, 0, 0))
    wt_spec = pl.BlockSpec((n_taps, Ft, Cs), lambda b, f: (0, f, 0))
    out_spec = pl.BlockSpec((1, Ft, Pl), lambda b, f: (b, f, 0))

    inputs = [xs, w_tap]
    in_specs = [xs_spec, wt_spec]
    if not apply_instancenorm:
        inputs.append(bias.reshape(F, 1).astype(jnp.float32))
        in_specs.append(pl.BlockSpec((Ft, 1), lambda b, f: (f, 0)))

    out = pl.pallas_call(
        kernel,
        out_shape=jax.ShapeDtypeStruct((B, F, Pl), out_dtype),
        grid_spec=pltpu.PrefetchScalarGridSpec(
            num_scalar_prefetch=0,
            grid=(B, nFt),                       # B outer (xs block stays put over inner f)
            in_specs=in_specs,
            out_specs=out_spec,
        ),
        compiler_params=pltpu.CompilerParams(
            dimension_semantics=("parallel", "parallel"),
            vmem_limit_bytes=int(vmem_limit)),
    )(*inputs)

    # Padded flat layout -> NCHW: drop lane padding and the halo row/column.
    out = out[:, :, :Pp].reshape(B, F, Hh, Wh)[:, :, :Ho, :Wo]
    return out


# ---------------------------------------------------------------------------
# Pure-JAX reference (bf16 matmuls inside the kernel -> loose tolerance)
# ---------------------------------------------------------------------------

def _reference(x, weight, bias, *, stride, padding, apply_instancenorm,
               eps=1e-5, slope=0.01):
    y = jax.lax.conv_general_dilated(
        x, weight, window_strides=(stride, stride),
        padding=((padding, padding), (padding, padding)),
        dimension_numbers=("NCHW", "OIHW", "NCHW"))
    y = y + bias.reshape(1, -1, 1, 1)
    if apply_instancenorm:
        mean = jnp.mean(y, axis=(2, 3), keepdims=True)
        var = jnp.mean((y - mean) ** 2, axis=(2, 3), keepdims=True)
        y = (y - mean) * jax.lax.rsqrt(var + eps)
    return jnp.where(y >= 0, y, slope * y)


if __name__ == "__main__":
    key = jax.random.PRNGKey(0)
    k_x, k_w, k_b, k_x2, k_w2, k_b2 = jax.random.split(key, 6)

    B, C_in, H, W = 2, 4, 16, 16
    filters, ksize = 8, 4

    x = jax.random.normal(k_x, (B, C_in, H, W), dtype=jnp.float32)
    fan_in = C_in * ksize * ksize
    bound = 1.0 / (fan_in ** 0.5)
    weight = jax.random.uniform(k_w, (filters, C_in, ksize, ksize),
                                minval=-bound, maxval=bound, dtype=jnp.float32)
    bias = jax.random.uniform(k_b, (filters,), minval=-bound, maxval=bound,
                              dtype=jnp.float32)

    # 1) default config: conv -> InstanceNorm -> LeakyReLU
    out = downsampler_forward(x, weight, bias, apply_instancenorm=True)
    out = jax.block_until_ready(out)
    assert out.shape == (B, filters, H // 2, W // 2), out.shape
    ref = _reference(x, weight, bias, stride=2, padding=1, apply_instancenorm=True)
    assert bool(jnp.allclose(out, ref, atol=5e-2, rtol=5e-2)), "instancenorm path mismatch"

    # 2) no InstanceNorm: conv(+bias) -> LeakyReLU
    out_nn = downsampler_forward(x, weight, bias, apply_instancenorm=False)
    out_nn = jax.block_until_ready(out_nn)
    ref_nn = _reference(x, weight, bias, stride=2, padding=1, apply_instancenorm=False)
    assert bool(jnp.allclose(out_nn, ref_nn, atol=5e-2, rtol=5e-2)), "no-norm path mismatch"

    # 3) B=1 with more filters: exercises the F-tiling / megacore split and bf16 output.
    filters2 = 16
    weight2 = jax.random.uniform(k_w2, (filters2, C_in, ksize, ksize),
                                 minval=-bound, maxval=bound, dtype=jnp.float32)
    bias2 = jax.random.uniform(k_b2, (filters2,), minval=-bound, maxval=bound,
                               dtype=jnp.float32)
    x2 = jax.random.normal(k_x2, (1, C_in, 32, 32), dtype=jnp.float32)
    out2 = downsampler_forward(x2, weight2, bias2, apply_instancenorm=True,
                               out_dtype=jnp.bfloat16)
    out2 = jax.block_until_ready(out2)
    assert out2.shape == (1, filters2, 16, 16), out2.shape
    ref2 = _reference(x2, weight2, bias2, stride=2, padding=1, apply_instancenorm=True)
    assert bool(jnp.allclose(out2.astype(jnp.float32), ref2, atol=1e-1, rtol=1e-1)), \
        "tiled-F path mismatch"

    print("KERNEL_OK")
</pallas_src>

<mosaic_0001>
module attributes {stable_mosaic.version = 11 : i64} {
  func.func @_down_kernel(%arg0: i32, %arg1: i32, %arg2: memref<1x17x128xbf16, #tpu.memory_space<vmem>>, %arg3: memref<4x8x17xbf16, #tpu.memory_space<vmem>>, %arg4: memref<1x8x128xf32, #tpu.memory_space<vmem>>) attributes {dimension_semantics = [#tpu.dimension_semantics<parallel>, #tpu.dimension_semantics<parallel>], iteration_bounds = array<i64: 2, 1>, scalar_prefetch = 0 : i64, scratch_operands = 0 : i64, tpu.core_type = #tpu.core_type<tc>, window_params = [{transform_indices = @transform_0, window_bounds = array<i64: 1, 17, 128>}, {transform_indices = @transform_1, window_bounds = array<i64: 4, 8, 17>}, {transform_indices = @transform_2, window_bounds = array<i64: 1, 8, 128>}]} {
    %c0 = arith.constant 0 : index
    %c0_0 = arith.constant 0 : index
    %c0_1 = arith.constant 0 : index
    %0 = vector.load %arg2[%c0, %c0_0, %c0_1] : memref<1x17x128xbf16, #tpu.memory_space<vmem>>, vector<1x17x128xbf16>
    %1 = vector.shape_cast %0 : vector<1x17x128xbf16> to vector<17x128xbf16>
    %c0_2 = arith.constant 0 : index
    %c0_3 = arith.constant 0 : index
    %c0_4 = arith.constant 0 : index
    %2 = vector.load %arg3[%c0_2, %c0_3, %c0_4] : memref<4x8x17xbf16, #tpu.memory_space<vmem>>, vector<1x8x17xbf16>
    %3 = vector.shape_cast %2 : vector<1x8x17xbf16> to vector<8x17xbf16>
    %cst = arith.constant dense<0.000000e+00> : vector<8x128xf32>
    %4 = tpu.matmul %3, %1, %cst {dimension_numbers = #tpu.dot_dimension_numbers<[1], [0], [0], [1], [0, 0, 1, 1], [], []>} : vector<8x17xbf16>, vector<17x128xbf16>, vector<8x128xf32> -> vector<8x128xf32>
    %c1 = arith.constant 1 : index
    %c0_5 = arith.constant 0 : index
    %c0_6 = arith.constant 0 : index
    %5 = vector.load %arg3[%c1, %c0_5, %c0_6] : memref<4x8x17xbf16, #tpu.memory_space<vmem>>, vector<1x8x17xbf16>
    %6 = vector.shape_cast %5 : vector<1x8x17xbf16> to vector<8x17xbf16>
    %cst_7 = arith.constant dense<0.000000e+00> : vector<8x128xf32>
    %7 = tpu.matmul %6, %1, %cst_7 {dimension_numbers = #tpu.dot_dimension_numbers<[1], [0], [0], [1], [0, 0, 1, 1], [], []>} : vector<8x17xbf16>, vector<17x128xbf16>, vector<8x128xf32> -> vector<8x128xf32>
    %c127_i32 = arith.constant 127 : i32
    %8 = tpu.dynamic_rotate %7 by %c127_i32 dim 1 : vector<8x128xf32>, i32 -> vector<8x128xf32>
    %9 = arith.addf %4, %8 : vector<8x128xf32>
    %c2 = arith.constant 2 : index
    %c0_8 = arith.constant 0 : index
    %c0_9 = arith.constant 0 : index
    %10 = vector.load %arg3[%c2, %c0_8, %c0_9] : memref<4x8x17xbf16, #tpu.memory_space<vmem>>, vector<1x8x17xbf16>
    %11 = vector.shape_cast %10 : vector<1x8x17xbf16> to vector<8x17xbf16>
    %cst_10 = arith.constant dense<0.000000e+00> : vector<8x128xf32>
    %12 = tpu.matmul %11, %1, %cst_10 {dimension_numbers = #tpu.dot_dimension_numbers<[1], [0], [0], [1], [0, 0, 1, 1], [], []>} : vector<8x17xbf16>, vector<17x128xbf16>, vector<8x128xf32> -> vector<8x128xf32>
    %c119_i32 = arith.constant 119 : i32
    %13 = tpu.dynamic_rotate %12 by %c119_i32 dim 1 : vector<8x128xf32>, i32 -> vector<8x128xf32>
    %14 = arith.addf %9, %13 : vector<8x128xf32>
    %c3 = arith.constant 3 : index
    %c0_11 = arith.constant 0 : index
    %c0_12 = arith.constant 0 : index
    %15 = vector.load %arg3[%c3, %c0_11, %c0_12] : memref<4x8x17xbf16, #tpu.memory_space<vmem>>, vector<1x8x17xbf16>
    %16 = vector.shape_cast %15 : vector<1x8x17xbf16> to vector<8x17xbf16>
    %cst_13 = arith.constant dense<0.000000e+00> : vector<8x128xf32>
    %17 = tpu.matmul %16, %1, %cst_13 {dimension_numbers = #tpu.dot_dimension_numbers<[1], [0], [0], [1], [0, 0, 1, 1], [], []>} : vector<8x17xbf16>, vector<17x128xbf16>, vector<8x128xf32> -> vector<8x128xf32>
    %c118_i32 = arith.constant 118 : i32
    %18 = tpu.dynamic_rotate %17 by %c118_i32 dim 1 : vector<8x128xf32>, i32 -> vector<8x128xf32>
    %19 = arith.addf %14, %18 : vector<8x128xf32>
    %20 = vector.extract_strided_slice %1 {offsets = [16, 0], sizes = [1, 128], strides = [1, 1]} : vector<17x128xbf16> to vector<1x128xbf16>
    %21 = arith.extf %20 : vector<1x128xbf16> to vector<1x128xf32>
    %22 = vector.broadcast %21 : vector<1x128xf32> to vector<8x128xf32>
    %23 = arith.mulf %19, %22 : vector<8x128xf32>
    %cst_14 = arith.constant dense<0.000000e+00> : vector<8xf32>
    %24 = vector.multi_reduction <add>, %23, %cst_14 [1] : vector<8x128xf32> to vector<8xf32>
    %25 = vector.shape_cast %24 : vector<8xf32> to vector<8x1xf32>
    %26 = arith.mulf %23, %19 : vector<8x128xf32>
    %cst_15 = arith.constant dense<0.000000e+00> : vector<8xf32>
    %27 = vector.multi_reduction <add>, %26, %cst_15 [1] : vector<8x128xf32> to vector<8xf32>
    %28 = vector.shape_cast %27 : vector<8xf32> to vector<8x1xf32>
    %cst_16 = arith.constant 1.562500e-02 : f32
    %29 = vector.broadcast %cst_16 : f32 to vector<8x1xf32>
    %30 = arith.mulf %25, %29 : vector<8x1xf32>
    %cst_17 = arith.constant 1.562500e-02 : f32
    %31 = vector.broadcast %cst_17 : f32 to vector<8x1xf32>
    %32 = arith.mulf %28, %31 : vector<8x1xf32>
    %33 = arith.mulf %30, %30 : vector<8x1xf32>
    %34 = arith.subf %32, %33 : vector<8x1xf32>
    %cst_18 = arith.constant 0.000000e+00 : f32
    %35 = vector.broadcast %cst_18 : f32 to vector<8x1xf32>
    %36 = arith.maximumf %34, %35 : vector<8x1xf32>
    %37 = vector.broadcast %30 : vector<8x1xf32> to vector<8x128xf32>
    %38 = arith.subf %19, %37 : vector<8x128xf32>
    %cst_19 = arith.constant 9.99999974E-6 : f32
    %39 = vector.broadcast %cst_19 : f32 to vector<8x1xf32>
    %40 = arith.addf %36, %39 : vector<8x1xf32>
    %41 = math.rsqrt %40 : vector<8x1xf32>
    %42 = vector.broadcast %41 : vector<8x1xf32> to vector<8x128xf32>
    %43 = arith.mulf %38, %42 : vector<8x128xf32>
    %cst_20 = arith.constant 0.000000e+00 : f32
    %44 = vector.broadcast %cst_20 : f32 to vector<8x128xf32>
    %45 = arith.cmpf oge, %43, %44 : vector<8x128xf32>
    %cst_21 = arith.constant 0.00999999977 : f32
    %46 = vector.broadcast %cst_21 : f32 to vector<8x128xf32>
    %47 = arith.mulf %46, %43 : vector<8x128xf32>
    %48 = arith.select %45, %43, %47 : vector<8x128xi1>, vector<8x128xf32>
    %c0_22 = arith.constant 0 : index
    %c0_23 = arith.constant 0 : index
    %c0_24 = arith.constant 0 : index
    %49 = vector.load %arg4[%c0_22, %c0_23, %c0_24] : memref<1x8x128xf32, #tpu.memory_space<vmem>>, vector<1x8x128xf32>
    %50 = vector.shape_cast %49 : vector<1x8x128xf32> to vector<8x128xf32>
    %51 = vector.shape_cast %48 : vector<8x128xf32> to vector<1x8x128xf32>
    tpu.vector_store %arg4[%c0_22, %c0_23, %c0_24], %51 {strides = array<i32>} : memref<1x8x128xf32, #tpu.memory_space<vmem>>, vector<1x8x128xf32>,
    return
  }
  func.func @transform_0(%arg0: i32, %arg1: i32) -> (i32, i32, i32) {
    %c0_i32 = arith.constant 0 : i32
    %c0_i32_0 = arith.constant 0 : i32
    %c0_i32_1 = arith.constant 0 : i32
    return %arg0, %c0_i32, %c0_i32_0 : i32, i32, i32
  }
  func.func @transform_1(%arg0: i32, %arg1: i32) -> (i32, i32, i32) {
    %c0_i32 = arith.constant 0 : i32
    %c0_i32_0 = arith.constant 0 : i32
    %c0_i32_1 = arith.constant 0 : i32
    return %c0_i32, %arg1, %c0_i32_0 : i32, i32, i32
  }
  func.func @transform_2(%arg0: i32, %arg1: i32) -> (i32, i32, i32) {
    %c0_i32 = arith.constant 0 : i32
    %c0_i32_0 = arith.constant 0 : i32
    return %arg0, %arg1, %c0_i32 : i32, i32, i32
  }
}

</mosaic_0001>

<llo_original>
// kernel: tpu_custom_call.1
$region0: #{tpu_custom_call.1}
  #allocation0 [shape = 'u32[]', space=smem, size = 0x4, offset = 0x4, fixed_abs, tag = 'smem constant byte address 0x4 - core index']
  #allocation1 [shape = 'u32[72,128]{1,0:T(1,128)}', space=vmem, size = 0x9000, scoped, tag = 'internal scratch']
  %s0 = inlined_call_operand.vmem [shape: bf16[2,17,128], index: 0, kind: input, shape index: {}]
  %s1 = inlined_call_operand.vmem [shape: bf16[4,8,17], index: 1, kind: input, shape index: {}]
  %s2 = inlined_call_operand.hbm [shape: f32[2,8,128], index: 2, kind: output, shape index: {}]
  %s3 = sld [smem:[#allocation0]]
  $region41: #{tpu_custom_call.1} parent=0
    _
  %s5 = ssub.s32 1, %s3
  %s6 = scalar_select 0, %s5, %s3
  $region1: #{tpu_custom_call.1} parent=0
    #allocation2 [shape = 'u8[8192]{0}', space=vmem, size = 0x2000, scoped, tag = 'output window, operand 0']
    #allocation3 [shape = 's32[2]{0}', space=sflag, size = 0x8, scoped, tag = 'scoped memory for tpu_custom_call.1']
    %7 = vsyncpa [#allocation3], 0
    %s8 = scalar_lea.sflag [#allocation3], 1
    %9 = vsyncpa %s8, 0
    loop: start=0, step=1, limit=4
    $region2: #{tpu_custom_call.1} parent=1 // loop_pre_header
      _
    $region3: #{tpu_custom_call.1} parent=1 // loop_header
      %s11 = sphi 0, %s15
      %p12 = scmp.ge.s32.totalorder %s11, 4
      %s18 = sphi 0, %s30
      %s19 = sphi 0, %s26
      %s20 = sphi 0, %s18
      %s21 = sphi 0, %s19
      %s22 = sphi 0, %s20
      %s23 = sphi 0, %s21
      %s33 = sphi 0, %s35
      %s36 = sphi 0, %s33
      %s37 = sphi 0, %s36
      %s53 = sphi 0, %s37
      %s59 = sphi 0, %s61
      %s62 = sphi 0, %s59
      %s63 = sphi 0, %s62
      %s79 = sphi 0, %s63
      %s87 = sphi 0, %s89
      %s90 = sphi 0, %s87
      %s91 = sphi 0, %s90
      %s107 = sphi 0, %s91
    $region4: #{tpu_custom_call.1} parent=1 // loop_header_branch
      %14 = sbr.rel (%p12) target = $region8
    $region5: #{tpu_custom_call.1} parent=1 // loop_body
      %s16 = ssub.s32 %s11, 1
      %s17 = ssub.s32 %s11, 2
      %s24 = sadd.s32 1, %s19
      %p25 = scmp.ge.s32.totalorder %s24, 1
      %s26 = scalar_select %p25, 0, %s24
      %s27 = sadd.s32 1, %s18
      %s28 = scalar_select %p25, %s27, %s18
      %p29 = scmp.ge.s32.totalorder %s28, 2
      %s30 = scalar_select %p29, 0, %s28
      %s31 = ssub.s32 %s18, %s30
      %p32 = scmp.eq.s32.totalorder %s31, 0
      %s34 = sadd.s32 %s33, 1
      %s35 = scalar_select %p32, %s33, %s34
      %p38 = pneg %p32
      %p39 = scmp.eq.s32.totalorder %s11, 1
      %p40 = por %p38, %p39
      %p41 = scmp.ne.s32.totalorder %s33, %s36
      %p42 = scmp.eq.s32.totalorder %s11, 0
      %p43 = por %p41, %p42
      %p44 = scmp.ne.s32.totalorder %s33, %s36
      %p45 = scmp.eq.s32.totalorder %s16, 1
      %p46 = por %p44, %p45
      %p47 = scmp.ne.s32.totalorder %s36, %s37
      %p48 = scmp.eq.s32.totalorder %s16, 0
      %p49 = por %p47, %p48
      %p50 = scmp.ne.s32.totalorder %s36, %s37
      %p51 = scmp.eq.s32.totalorder %s17, 1
      %p52 = por %p50, %p51
      %p54 = scmp.ne.s32.totalorder %s37, %s53
      %p55 = scmp.eq.s32.totalorder %s17, 0
      %p56 = por %p54, %p55
      %s57 = ssub.s32 %s19, %s26
      %p58 = scmp.eq.s32.totalorder %s57, 0
      %s60 = sadd.s32 %s59, 1
      %s61 = scalar_select %p58, %s59, %s60
      %p64 = pneg %p58
      %p65 = scmp.eq.s32.totalorder %s11, 1
      %p66 = por %p64, %p65
      %p67 = scmp.ne.s32.totalorder %s59, %s62
      %p68 = scmp.eq.s32.totalorder %s11, 0
      %p69 = por %p67, %p68
      %p70 = scmp.ne.s32.totalorder %s59, %s62
      %p71 = scmp.eq.s32.totalorder %s16, 1
      %p72 = por %p70, %p71
      %p73 = scmp.ne.s32.totalorder %s62, %s63
      %p74 = scmp.eq.s32.totalorder %s16, 0
      %p75 = por %p73, %p74
      %p76 = scmp.ne.s32.totalorder %s62, %s63
      %p77 = scmp.eq.s32.totalorder %s17, 1
      %p78 = por %p76, %p77
      %p80 = scmp.ne.s32.totalorder %s63, %s79
      %p81 = scmp.eq.s32.totalorder %s17, 0
      %p82 = por %p80, %p81
      %s83 = ssub.s32 %s18, %s30
      %s84 = ssub.s32 %s19, %s26
      %s85 = sor.u32 %s83, %s84
      %p86 = scmp.eq.s32.totalorder %s85, 0
      %s88 = sadd.s32 %s87, 1
      %s89 = scalar_select %p86, %s87, %s88
      %p92 = pneg %p86
      %p93 = scmp.eq.s32.totalorder %s11, 1
      %p94 = por %p92, %p93
      %p95 = scmp.ne.s32.totalorder %s87, %s90
      %p96 = scmp.eq.s32.totalorder %s11, 0
      %p97 = por %p95, %p96
      %p98 = scmp.ne.s32.totalorder %s87, %s90
      %p99 = scmp.eq.s32.totalorder %s16, 1
      %p100 = por %p98, %p99
      %p101 = scmp.ne.s32.totalorder %s90, %s91
      %p102 = scmp.eq.s32.totalorder %s16, 0
      %p103 = por %p101, %p102
      %p104 = scmp.ne.s32.totalorder %s90, %s91
      %p105 = scmp.eq.s32.totalorder %s17, 1
      %p106 = por %p104, %p105
      %p108 = scmp.ne.s32.totalorder %s91, %s107
      %p109 = scmp.eq.s32.totalorder %s17, 0
      %p110 = por %p108, %p109
      %p111 = scmp.le.s32.totalorder 1, %s11
      %p112 = scmp.lt.s32.totalorder %s11, 3
      %p113 = pnand %p111, %p112
      %p114 = pneg %p113
      // Predicated region
      $region9: #{tpu_custom_call.1} parent=5 // pred_check
        _
      $region10: #{tpu_custom_call.1} parent=5 // pred_check_branch
        %116 = sbr.rel (%p113) target = $region12
      $region11: #{tpu_custom_call.1} parent=5 // pred_region
        %s117 = ssub.s32 %s11, 1
        // Predicated region
        $region13: #{tpu_custom_call.1} parent=11 // pred_check
          %p118 = pneg %p75
        $region14: #{tpu_custom_call.1} parent=11 // pred_check_branch
          %120 = sbr.rel (%p118) target = $region16
        $region15: #{tpu_custom_call.1} parent=11 // pred_region
          %p121 = scmp.lt.s32.totalorder %s21, 0
          %s122 = scalar_select %p121, %s21, 0
          %s123 = smul.addr %s122, 4
          %s124 = scalar_lea.vmem %s1, %s123
        $region16: #{tpu_custom_call.1} parent=11 // pred_fallthru
          _
      $region12: #{tpu_custom_call.1} parent=5 // pred_fallthru
        _
      %p125 = scmp.lt.s32.totalorder %s11, 2
      // Predicated region
      $region17: #{tpu_custom_call.1} parent=5 // pred_check
        %p126 = pneg %p125
      $region18: #{tpu_custom_call.1} parent=5 // pred_check_branch
        %128 = sbr.rel (%p126) target = $region20
      $region19: #{tpu_custom_call.1} parent=5 // pred_region
        // Predicated region
        $region21: #{tpu_custom_call.1} parent=19 // pred_check
          %p129 = pneg %p43
        $region22: #{tpu_custom_call.1} parent=19 // pred_check_branch
          %131 = sbr.rel (%p129) target = $region24
        $region23: #{tpu_custom_call.1} parent=19 // pred_region
          %p132 = scmp.lt.s32.totalorder %s18, 1
          %s133 = scalar_select %p132, %s18, 1
          %s134 = smul.addr %s133, 3
          %s135 = smul.addr %s134, 4
          %s136 = scalar_lea.vmem %s0, %s135
        $region24: #{tpu_custom_call.1} parent=19 // pred_fallthru
          _
      $region20: #{tpu_custom_call.1} parent=5 // pred_fallthru
        _
      %p137 = scmp.le.s32.totalorder 1, %s11
      %p138 = scmp.lt.s32.totalorder %s11, 3
      %p139 = pnand %p137, %p138
      %p140 = pneg %p139
      // Predicated region
      $region25: #{tpu_custom_call.1} parent=5 // pred_check
        _
      $region26: #{tpu_custom_call.1} parent=5 // pred_check_branch
        %142 = sbr.rel (%p139) target = $region28
      $region27: #{tpu_custom_call.1} parent=5 // pred_region
        %s143 = ssub.s32 %s11, 1
        %p144 = scmp.lt.s32.totalorder %s20, 1
        %s145 = scalar_select %p144, %s20, 1
        %s146 = smul.addr %s145, 3
        %s147 = smul.addr %s146, 4
        %s148 = scalar_lea.vmem %s0, %s147
        %p149 = pneg %p49
        %p150 = pneg %p46
        %p151 = scmp.lt.s32.totalorder %s21, 0
        %s152 = scalar_select %p151, %s21, 0
        %s153 = smul.addr %s152, 4
        %s154 = scalar_lea.vmem %s1, %s153
        %p155 = pneg %p75
        %p156 = pneg %p72
        %p157 = pneg %p103
        %p158 = pneg %p100
        %s159 = sand.u32 %s90, 1
        %s160 = scalar_lea.sflag [#allocation3], %s159
        %s161 = sand.u32 %s90, 1
        %s162 = smul.addr %s161, 8
        %s163 = scalar_lea.vmem [#allocation2], %s162
        %p164 = scmp.lt.s32.totalorder %s20, 1
        %s165 = scalar_select %p164, %s20, 1
        %s166 = smul.addr %s165, 3
        %s167 = smul.addr %s166, 4
        %s168 = scalar_lea.vmem %s0, %s167
        %p169 = scmp.lt.s32.totalorder %s21, 0
        %s170 = scalar_select %p169, %s21, 0
        %s171 = smul.addr %s170, 4
        %s172 = scalar_lea.vmem %s1, %s171
        %v174 = vld [vmem:[%s168] sm:$0xf]
        %v175 = vld [vmem:[%s168 + $0x4] sm:$0xf]
        %v176 = vld [vmem:[%s168 + $0x8] sm:$0x1]
        %v177 = vld [vmem:[%s172] sm:$0xf]
        %s178 = scalar_lea.vmem %s172, 4
        %v179 = vld [vmem:[%s178] sm:$0xf]
        %v183 = vunpack.c.l.b16 %v174
        %v184 = vunpack.c.l.b16 %v175
        %v185 = vunpack.c.l.b16 %v176
        %v186 = vpack.c.b16 %v184, %v183
        %v187 = vpack.c.b16 %v185, %v185
        %vm189 = vcmask 138240
        %v191 = vsel %vm189, %v179, 0
        %vm193 = vcmask 1040384
        %v194 = vsel 0, 4294967295, 65535
        %v195 = vsel %vm193, %v194, 0
        %v197 = vand.u32 %v187, %v195
        %199 = vmatpush.bf16.msra.mxu0 0
        %200 = vmatpush.bf16.msra.mxu0 0
        %201 = vmatpush.bf16.msra.mxu0 0
        %202 = vmatpush.bf16.msra.mxu0 0
        %203 = vmatpush.bf16.msra.mxu0 0
        %204 = vmatpush.bf16.msra.mxu0 0
        %205 = vmatpush.bf16.msra.mxu0 %v197
        %206 = vmatpush.bf16.msra.mxu0 %v186
        %207 = vmatmul.bf16.gmra.mxu0 %v191
        %v208 = vpop.f32.mrf.mxu0
        %v209 = vadd.f32 0.0, %v208
        %v210 = vpop.f32.mrf.mxu0
        %211 = vdwg.mxu0
        %212 = vrot.lane.b32.xlu0 %v209, 127
        %v213 = vpop.permute.xlu0 %212
        %v215 = vsel %vm189, %v177, 0
        %217 = vmatpush.bf16.msra.mxu0 0
        %218 = vmatpush.bf16.msra.mxu0 0
        %219 = vmatpush.bf16.msra.mxu0 0
        %220 = vmatpush.bf16.msra.mxu0 0
        %221 = vmatpush.bf16.msra.mxu0 0
        %222 = vmatpush.bf16.msra.mxu0 0
        %223 = vmatpush.bf16.msra.mxu0 %v197
        %224 = vmatpush.bf16.msra.mxu0 %v186
        %225 = vmatmul.bf16.gmra.mxu0 %v215
        %v226 = vpop.f32.mrf.mxu0
        %v227 = vadd.f32 %v213, %v226
        %v228 = vpop.f32.mrf.mxu0
        %229 = vdwg.mxu0
        %s230 = scalar_lea.vmem %s172, 8
        %v231 = vld [vmem:[%s230] sm:$0xf]
        %v233 = vsel %vm189, %v231, 0
        %235 = vmatpush.bf16.msra.mxu0 0
        %236 = vmatpush.bf16.msra.mxu0 0
        %237 = vmatpush.bf16.msra.mxu0 0
        %238 = vmatpush.bf16.msra.mxu0 0
        %239 = vmatpush.bf16.msra.mxu0 0
        %240 = vmatpush.bf16.msra.mxu0 0
        %241 = vmatpush.bf16.msra.mxu0 %v197
        %242 = vmatpush.bf16.msra.mxu0 %v186
        %243 = vmatmul.bf16.gmra.mxu0 %v233
        %v244 = vpop.f32.mrf.mxu0
        %v245 = vadd.f32 0.0, %v244
        %v246 = vpop.f32.mrf.mxu0
        %247 = vdwg.mxu0
        %248 = vrot.lane.b32.xlu0 %v245, 119
        %v249 = vpop.permute.xlu0 %248
        %v250 = vadd.f32 %v227, %v249
        %s251 = scalar_lea.vmem %s172, 12
        %v252 = vld [vmem:[%s251] sm:$0xf]
        %v254 = vsel %vm189, %v252, 0
        %256 = vmatpush.bf16.msra.mxu0 0
        %257 = vmatpush.bf16.msra.mxu0 0
        %258 = vmatpush.bf16.msra.mxu0 0
        %259 = vmatpush.bf16.msra.mxu0 0
        %260 = vmatpush.bf16.msra.mxu0 0
        %261 = vmatpush.bf16.msra.mxu0 0
        %262 = vmatpush.bf16.msra.mxu0 %v197
        %263 = vmatpush.bf16.msra.mxu0 %v186
        %264 = vmatmul.bf16.gmra.mxu0 %v254
        %v265 = vpop.f32.mrf.mxu0
        %v266 = vadd.f32 0.0, %v265
        %v267 = vpop.f32.mrf.mxu0
        %268 = vdwg.mxu0
        %269 = vrot.lane.b32.xlu0 %v266, 118
        %v270 = vpop.permute.xlu0 %269
        %v271 = vadd.f32 %v250, %v270
        %v272 = vunpack.c.l.bf16 %v176
        %v273 = vperm.slane %v272, 0
        %v274 = vmul.f32 %v271, %v273
        %275 = vadd.xlane.f32.xlu0 %v274
        %v276 = vpop.xlane.xlu0 %275
        %v277 = vmul.f32 %v274, %v271
        %278 = vadd.xlane.f32.xlu0 %v277
        %v279 = vpop.xlane.xlu0 %278
        %v280 = vmul.f32 %v276, 0.015625
        %v281 = vmul.f32 %v279, 0.015625
        %v282 = vmul.f32 %v280, %v280
        %v283 = vsub.f32 %v281, %v282
        %v284 = vmax.f32 %v283, 0.0
        %v285 = vsub.f32 %v271, %v280
        %v286 = vadd.f32 %v284, 1e-05
        %v287 = vrsqrt.pop %v286
        %v288 = vmul.f32 %v287, %v286
        %v289 = vmul.f32 %v288, %v287
        %v290 = vmul.f32 0.5, %v289
        %v291 = vsub.f32 1.5, %v290
        %v292 = vmul.f32 %v287, %v291
        %vm293 = vweird.f32 %v286
        %vm294 = vweird.f32 %v287
        %vm295 = vmor %vm293, %vm294
        %v296 = vsel %vm295, %v287, %v292
        %v297 = vmul.f32 %v285, %v296
        %vm298 = vcmp.ge.f32.partialorder %v297, 0.0
        %v299 = vmul.f32 %v297, 0.01
        %v300 = vsel %vm298, %v297, %v299
        %301 = vst [vmem:[%s163] sm:$0xff] %v300
        %s302 = sand.u32 %s90, 1
        %s303 = scalar_lea.sflag [#allocation3], %s302
        %s304 = sand.u32 %s90, 1
        %s305 = smul.addr %s304, 8
        %s306 = scalar_lea.vmem [#allocation2], %s305
        // Predicated region
        $region29: #{tpu_custom_call.1} parent=27 // pred_check
          %p307 = pneg %p100
        $region30: #{tpu_custom_call.1} parent=27 // pred_check_branch
          %309 = sbr.rel (%p307) target = $region32
        $region31: #{tpu_custom_call.1} parent=27 // pred_region
          %311 = vsyncadd %s303, 0
          %s312 = sadd.s32 %s21, %s20
          %s313 = smul.addr %s312, 8
          %s314 = scalar_lea.hbm %s2, %s313
          %s316 = sshll.u32 %s306, 4
          %s317 = int_to_ptr.vmem [resolvable:$true] %s316
          %s318 = sshll.u32 %s314, 4
          %s319 = int_to_ptr.hbm [resolvable:$true] %s318
          %321 = dma.vmem_to_hbm [thread:$0]  %s317, 128, %s319, %s303
        $region32: #{tpu_custom_call.1} parent=27 // pred_fallthru
          _
      $region28: #{tpu_custom_call.1} parent=5 // pred_fallthru
        _
      %p322 = scmp.le.s32.totalorder 2, %s11
      // Predicated region
      $region33: #{tpu_custom_call.1} parent=5 // pred_check
        %p323 = pneg %p322
      $region34: #{tpu_custom_call.1} parent=5 // pred_check_branch
        %325 = sbr.rel (%p323) target = $region36
      $region35: #{tpu_custom_call.1} parent=5 // pred_region
        %s326 = ssub.s32 %s11, 2
        // Predicated region
        $region37: #{tpu_custom_call.1} parent=35 // pred_check
          %p327 = pneg %p106
        $region38: #{tpu_custom_call.1} parent=35 // pred_check_branch
          %329 = sbr.rel (%p327) target = $region40
        $region39: #{tpu_custom_call.1} parent=35 // pred_region
          %s330 = sand.u32 %s91, 1
          %s331 = scalar_lea.sflag [#allocation3], %s330
          %s332 = sand.u32 %s91, 1
          %s333 = smul.addr %s332, 8
          %s334 = scalar_lea.vmem [#allocation2], %s333
          %336 = dma.done %s331, 128
        $region40: #{tpu_custom_call.1} parent=35 // pred_fallthru
          _
      $region36: #{tpu_custom_call.1} parent=5 // pred_fallthru
        _
    $region6: #{tpu_custom_call.1} parent=1 // loop_footer
      %s15 = sadd.s32 1, %s11
    $region7: #{tpu_custom_call.1} parent=1 // loop_footer_branch
      %10 = sbr.rel target = $region3
    $region8: #{tpu_custom_call.1} parent=1 // loop_exit
      _
    %337 = vsyncpa [#allocation3], 1
    %s338 = scalar_lea.sflag [#allocation3], 1
    %339 = vsyncpa %s338, 1

</llo_original>
